<compile_context>
chip_gen: v6e
topology: v6e:2x2x1
jax: 0.10.0
libtpu: 0.0.40
codegen_flags: <defaults>
</compile_context>

<pallas_src>
import functools
import math

import jax
import jax.numpy as jnp
from jax.experimental import pallas as pl
from jax.experimental.pallas import tpu as pltpu


def _round_up(x: int, m: int) -> int:
    return pl.cdiv(x, m) * m


# ---------------------------------------------------------------------------
# Fused Pallas kernel: whole MLP for one row tile.
#   x_ref : (tm, D)      padded input activations (lane-dense)
#   w_ref : (L, D, D)    padded, stacked weights (in_features x out_features)
#   b_ref : (L, 1, D)    padded, stacked biases
#   o_ref : (tm, D)      padded output (only [:, :out_dim] is meaningful)
# ---------------------------------------------------------------------------
def _mlp_fused_kernel(x_ref, w_ref, b_ref, o_ref, *, n_layers: int):
    h = x_ref[...]
    # n_layers is small and static -> unrolled Python loop (traced once);
    # intermediates live entirely in vregs/VMEM.
    for l in range(n_layers):
        h = jnp.dot(h, w_ref[l], preferred_element_type=jnp.float32)  # MXU
        h = h + b_ref[l]                                              # VPU, (1,D) bcast
        if l < n_layers - 1:
            h = jnp.maximum(h, 0.0)                                   # ReLU (hidden only)
    o_ref[...] = h.astype(o_ref.dtype)


# ---------------------------------------------------------------------------
# Parameter init / packing
# ---------------------------------------------------------------------------
def init_mlp_params(key, in_dim, out_dim, hidden_list):
    """Mimics PyTorch nn.Linear default init: U(-1/sqrt(fan_in), 1/sqrt(fan_in)).

    Returns a list of (W, b) with W shaped (in_features, out_features).
    """
    dims = [in_dim] + list(hidden_list) + [out_dim]
    params = []
    for idx in range(len(dims) - 1):
        fan_in, fan_out = dims[idx], dims[idx + 1]
        key, wk, bk = jax.random.split(key, 3)
        bound = 1.0 / math.sqrt(fan_in)
        w = jax.random.uniform(wk, (fan_in, fan_out), jnp.float32, -bound, bound)
        b = jax.random.uniform(bk, (fan_out,), jnp.float32, -bound, bound)
        params.append((w, b))
    return params


def pack_mlp_params(params, lane: int = 128):
    """One-time zero-padding of all layers to a common lane-dense width D.

    Returns (w_stack, b_stack, D, in_dim, out_dim).
    """
    in_dim = params[0][0].shape[0]
    out_dim = params[-1][0].shape[1]
    dims = [in_dim] + [w.shape[1] for w, _ in params]
    D = _round_up(max(dims), lane)
    L = len(params)

    w_stack = jnp.zeros((L, D, D), jnp.float32)
    b_stack = jnp.zeros((L, 1, D), jnp.float32)
    for l, (w, b) in enumerate(params):
        w_stack = w_stack.at[l, : w.shape[0], : w.shape[1]].set(w)
        b_stack = b_stack.at[l, 0, : b.shape[0]].set(b)
    return w_stack, b_stack, D, in_dim, out_dim


# ---------------------------------------------------------------------------
# Forward pass (single pallas_call for the whole MLP)
# ---------------------------------------------------------------------------
def mlp_forward(w_stack, b_stack, in_dim, out_dim, x, *, tm: int | None = None):
    lead_shape = x.shape[:-1]
    assert x.shape[-1] == in_dim, (x.shape, in_dim)

    L, D, _ = w_stack.shape
    h = x.reshape(-1, in_dim)                       # view(-1, x.shape[-1])
    M = h.shape[0]

    # Row tile: biggest tile that amortizes per-step overhead without blowing
    # VMEM (activation tiles are tiny relative to the resident weight stack
    # for typical D, so up to 1024 rows is safe); never bigger than needed.
    if tm is None:
        cap = 1024 if D <= 1024 else 256
        tm = min(cap, _round_up(max(M, 8), 8))
    m_pad = _round_up(M, tm)

    # Single pad at the kernel boundary: rows -> m_pad, features -> D lanes.
    x_pad = jnp.zeros((m_pad, D), jnp.float32).at[:M, :in_dim].set(h)

    # Resident-footprint estimate (double-buffered specs) -> raise the scoped
    # VMEM limit only if the conservative default would OOM.
    bytes_f32 = 4
    est_vmem = (
        2 * (L * D * D * bytes_f32)   # weight stack
        + 2 * (L * D * bytes_f32)     # bias stack
        + 2 * (tm * D * bytes_f32)    # input tile
        + 2 * (tm * D * bytes_f32)    # output tile
    )
    vmem_limit = None
    if est_vmem > (16 << 20):
        vmem_limit = min(int(est_vmem * 1.5) + (1 << 20), 60 << 20)
    # TODO(synk): for hidden dims large enough that the stacked weights exceed
    # ~60 MiB (v7x physical VMEM), tile the K/N weight axes with a grid axis
    # instead of keeping the full stack resident, and consider bf16 weights.

    kernel = functools.partial(_mlp_fused_kernel, n_layers=L)
    out = pl.pallas_call(
        kernel,
        out_shape=jax.ShapeDtypeStruct((m_pad, D), jnp.float32),
        grid_spec=pltpu.PrefetchScalarGridSpec(
            num_scalar_prefetch=0,
            grid=(m_pad // tm,),
            in_specs=[
                pl.BlockSpec((tm, D), lambda i: (i, 0)),        # activation tile
                pl.BlockSpec((L, D, D), lambda i: (0, 0, 0)),   # all weights, resident
                pl.BlockSpec((L, 1, D), lambda i: (0, 0, 0)),   # all biases, resident
            ],
            out_specs=pl.BlockSpec((tm, D), lambda i: (i, 0)),  # lane-dense output
        ),
        compiler_params=pltpu.CompilerParams(
            dimension_semantics=("parallel",),   # M axis shards across TCs (v7x)
            vmem_limit_bytes=vmem_limit,
        ),
    )(x_pad, w_stack, b_stack)

    # Single slice: drop row padding and lane padding of the final layer.
    return out[:M, :out_dim].reshape(*lead_shape, out_dim)


# Pure-JAX reference for a correctness sanity check.
def mlp_forward_ref(params, x):
    lead_shape = x.shape[:-1]
    h = x.reshape(-1, x.shape[-1])
    n_layers = len(params)
    for li, (w, b) in enumerate(params):
        h = h @ w + b
        if li < n_layers - 1:
            h = jnp.maximum(h, 0.0)
    return h.reshape(*lead_shape, -1)


if __name__ == "__main__":
    key = jax.random.PRNGKey(0)

    # Small shapes consistent with how this MLP is used (coordinate / feature
    # decoder over a batch of query points): features in the last dim.
    batch, n_points, in_dim = 2, 64, 4
    hidden_list = [32, 32]
    out_dim = 3

    key, pkey, xkey = jax.random.split(key, 3)
    params = init_mlp_params(pkey, in_dim, out_dim, hidden_list)
    x = jax.random.normal(xkey, (batch, n_points, in_dim), jnp.float32)

    # One-time packing of all layer params into lane-dense stacked arrays.
    w_stack, b_stack, D, in_dim_p, out_dim_p = pack_mlp_params(params)

    y = mlp_forward(w_stack, b_stack, in_dim_p, out_dim_p, x)
    y = jax.block_until_ready(y)

    y_ref = mlp_forward_ref(params, x)
    assert y.shape == (batch, n_points, out_dim), y.shape
    assert jnp.allclose(y, y_ref, atol=1e-5, rtol=1e-5), "mismatch vs reference"

    print("KERNEL_OK")
</pallas_src>

<mosaic_0001>
module attributes {stable_mosaic.version = 11 : i64} {
  func.func @_mlp_fused_kernel(%arg0: i32, %arg1: memref<128x128xf32, #tpu.memory_space<vmem>>, %arg2: memref<3x128x128xf32, #tpu.memory_space<vmem>>, %arg3: memref<3x1x128xf32, #tpu.memory_space<vmem>>, %arg4: memref<128x128xf32, #tpu.memory_space<vmem>>) attributes {dimension_semantics = [#tpu.dimension_semantics<parallel>], iteration_bounds = array<i64: 1>, scalar_prefetch = 0 : i64, scratch_operands = 0 : i64, tpu.core_type = #tpu.core_type<tc>, window_params = [{transform_indices = @transform_0, window_bounds = array<i64: 128, 128>}, {pipeline_mode = #tpu.pipeline_mode<synchronous>, transform_indices = @transform_1, window_bounds = array<i64: 3, 128, 128>}, {pipeline_mode = #tpu.pipeline_mode<synchronous>, transform_indices = @transform_2, window_bounds = array<i64: 3, 1, 128>}, {transform_indices = @transform_3, window_bounds = array<i64: 128, 128>}]} {
    %c0 = arith.constant 0 : index
    %c0_0 = arith.constant 0 : index
    %0 = vector.load %arg1[%c0, %c0_0] : memref<128x128xf32, #tpu.memory_space<vmem>>, vector<128x128xf32>
    %c0_1 = arith.constant 0 : index
    %c0_2 = arith.constant 0 : index
    %c0_3 = arith.constant 0 : index
    %1 = vector.load %arg2[%c0_1, %c0_2, %c0_3] : memref<3x128x128xf32, #tpu.memory_space<vmem>>, vector<1x128x128xf32>
    %2 = vector.shape_cast %1 : vector<1x128x128xf32> to vector<128x128xf32>
    %cst = arith.constant dense<0.000000e+00> : vector<128x128xf32>
    %3 = tpu.matmul %0, %2, %cst {dimension_numbers = #tpu.dot_dimension_numbers<[1], [0], [0], [1], [0, 0, 1, 1], [], []>} : vector<128x128xf32>, vector<128x128xf32>, vector<128x128xf32> -> vector<128x128xf32>
    %c0_4 = arith.constant 0 : index
    %c0_5 = arith.constant 0 : index
    %c0_6 = arith.constant 0 : index
    %4 = vector.load %arg3[%c0_4, %c0_5, %c0_6] : memref<3x1x128xf32, #tpu.memory_space<vmem>>, vector<1x1x128xf32>
    %5 = vector.shape_cast %4 : vector<1x1x128xf32> to vector<1x128xf32>
    %6 = vector.broadcast %5 : vector<1x128xf32> to vector<128x128xf32>
    %7 = arith.addf %3, %6 : vector<128x128xf32>
    %cst_7 = arith.constant 0.000000e+00 : f32
    %8 = vector.broadcast %cst_7 : f32 to vector<128x128xf32>
    %9 = arith.maximumf %7, %8 : vector<128x128xf32>
    %c1 = arith.constant 1 : index
    %c0_8 = arith.constant 0 : index
    %c0_9 = arith.constant 0 : index
    %10 = vector.load %arg2[%c1, %c0_8, %c0_9] : memref<3x128x128xf32, #tpu.memory_space<vmem>>, vector<1x128x128xf32>
    %11 = vector.shape_cast %10 : vector<1x128x128xf32> to vector<128x128xf32>
    %cst_10 = arith.constant dense<0.000000e+00> : vector<128x128xf32>
    %12 = tpu.matmul %9, %11, %cst_10 {dimension_numbers = #tpu.dot_dimension_numbers<[1], [0], [0], [1], [0, 0, 1, 1], [], []>} : vector<128x128xf32>, vector<128x128xf32>, vector<128x128xf32> -> vector<128x128xf32>
    %c1_11 = arith.constant 1 : index
    %c0_12 = arith.constant 0 : index
    %c0_13 = arith.constant 0 : index
    %13 = vector.load %arg3[%c1_11, %c0_12, %c0_13] : memref<3x1x128xf32, #tpu.memory_space<vmem>>, vector<1x1x128xf32>
    %14 = vector.shape_cast %13 : vector<1x1x128xf32> to vector<1x128xf32>
    %15 = vector.broadcast %14 : vector<1x128xf32> to vector<128x128xf32>
    %16 = arith.addf %12, %15 : vector<128x128xf32>
    %cst_14 = arith.constant 0.000000e+00 : f32
    %17 = vector.broadcast %cst_14 : f32 to vector<128x128xf32>
    %18 = arith.maximumf %16, %17 : vector<128x128xf32>
    %c2 = arith.constant 2 : index
    %c0_15 = arith.constant 0 : index
    %c0_16 = arith.constant 0 : index
    %19 = vector.load %arg2[%c2, %c0_15, %c0_16] : memref<3x128x128xf32, #tpu.memory_space<vmem>>, vector<1x128x128xf32>
    %20 = vector.shape_cast %19 : vector<1x128x128xf32> to vector<128x128xf32>
    %cst_17 = arith.constant dense<0.000000e+00> : vector<128x128xf32>
    %21 = tpu.matmul %18, %20, %cst_17 {dimension_numbers = #tpu.dot_dimension_numbers<[1], [0], [0], [1], [0, 0, 1, 1], [], []>} : vector<128x128xf32>, vector<128x128xf32>, vector<128x128xf32> -> vector<128x128xf32>
    %c2_18 = arith.constant 2 : index
    %c0_19 = arith.constant 0 : index
    %c0_20 = arith.constant 0 : index
    %22 = vector.load %arg3[%c2_18, %c0_19, %c0_20] : memref<3x1x128xf32, #tpu.memory_space<vmem>>, vector<1x1x128xf32>
    %23 = vector.shape_cast %22 : vector<1x1x128xf32> to vector<1x128xf32>
    %24 = vector.broadcast %23 : vector<1x128xf32> to vector<128x128xf32>
    %25 = arith.addf %21, %24 : vector<128x128xf32>
    %c0_21 = arith.constant 0 : index
    %c0_22 = arith.constant 0 : index
    %26 = vector.load %arg4[%c0_21, %c0_22] : memref<128x128xf32, #tpu.memory_space<vmem>>, vector<128x128xf32>
    tpu.vector_store %arg4[%c0_21, %c0_22], %25 {strides = array<i32>} : memref<128x128xf32, #tpu.memory_space<vmem>>, vector<128x128xf32>,
    return
  }
  func.func @transform_0(%arg0: i32) -> (i32, i32) {
    %c0_i32 = arith.constant 0 : i32
    %c0_i32_0 = arith.constant 0 : i32
    return %arg0, %c0_i32 : i32, i32
  }
  func.func @transform_1(%arg0: i32) -> (i32, i32, i32) {
    %c0_i32 = arith.constant 0 : i32
    %c0_i32_0 = arith.constant 0 : i32
    %c0_i32_1 = arith.constant 0 : i32
    %c0_i32_2 = arith.constant 0 : i32
    return %c0_i32, %c0_i32_0, %c0_i32_1 : i32, i32, i32
  }
  func.func @transform_2(%arg0: i32) -> (i32, i32, i32) {
    %c0_i32 = arith.constant 0 : i32
    %c0_i32_0 = arith.constant 0 : i32
    %c0_i32_1 = arith.constant 0 : i32
    %c0_i32_2 = arith.constant 0 : i32
    return %c0_i32, %c0_i32_0, %c0_i32_1 : i32, i32, i32
  }
  func.func @transform_3(%arg0: i32) -> (i32, i32) {
    %c0_i32 = arith.constant 0 : i32
    %c0_i32_0 = arith.constant 0 : i32
    return %arg0, %c0_i32 : i32, i32
  }
}

</mosaic_0001>

<llo_original>
// kernel: tpu_custom_call.1
$region0: #{tpu_custom_call.1}
  #allocation0 [shape = 'u32[]', space=smem, size = 0x4, offset = 0x4, fixed_abs, tag = 'smem constant byte address 0x4 - core index']
  #allocation1 [shape = 'u32[144,128]{1,0:T(1,128)}', space=vmem, size = 0x12000, scoped, tag = 'internal scratch']
  %s0 = inlined_call_operand.hbm [shape: f32[128,128], index: 0, kind: input, shape index: {}]
  %s1 = inlined_call_operand.hbm [shape: f32[3,128,128], index: 1, kind: input, shape index: {}]
  %s2 = inlined_call_operand.vmem [shape: f32[3,1,128], index: 2, kind: input, shape index: {}]
  %s3 = inlined_call_operand.hbm [shape: f32[128,128], index: 3, kind: output, shape index: {}]
  %s4 = sld [smem:[#allocation0]]
  $region30: #{tpu_custom_call.1} parent=0
    _
  %s6 = ssub.s32 1, %s4
  %s7 = scalar_select 0, %s6, %s4
  $region1: #{tpu_custom_call.1} parent=0
    #allocation2 [shape = 'u8[65536]{0}', space=vmem, size = 0x10000, scoped, tag = 'input window, operand 0, single buffered']
    #allocation3 [shape = 's32[1]{0}', space=sflag, size = 0x4, scoped, tag = 'scoped memory for tpu_custom_call.1']
    #allocation4 [shape = 's32[1]{0}', space=sflag, size = 0x4, scoped, tag = 'scoped memory for tpu_custom_call.1']
    #allocation5 [shape = 'u8[196608]{0}', space=vmem, size = 0x30000, scoped, tag = 'input window, operand 1, single buffered']
    #allocation6 [shape = 's32[1]{0}', space=sflag, size = 0x4, scoped, tag = 'scoped memory for tpu_custom_call.1']
    #allocation7 [shape = 'u8[65536]{0}', space=vmem, size = 0x10000, scoped, tag = 'output window, operand 0, single buffered']
    %8 = vsyncpa [#allocation3], 0
    %9 = vsyncpa [#allocation6], 0
    %10 = vsyncpa [#allocation4], 0
    // Predicated region
    $region2: #{tpu_custom_call.1} parent=1 // pred_check
      _
    $region3: #{tpu_custom_call.1} parent=1 // pred_check_branch
      %12 = sbr.rel (0) target = $region5
    $region4: #{tpu_custom_call.1} parent=1 // pred_region
      %s14 = ssub.s32 2048, 2048
      %15 = vsyncadd [#allocation3], %s14
      %s16 = sshll.u32 [#allocation2], 4
      %s17 = int_to_ptr.vmem [resolvable:$true] %s16
      %22 = dma.hbm_to_vmem [thread:$0]  %s0, 2048, %s17, [#allocation3], 128, 128, 8
    $region5: #{tpu_custom_call.1} parent=1 // pred_fallthru
      _
    // Predicated region
    $region6: #{tpu_custom_call.1} parent=1 // pred_check
      _
    $region7: #{tpu_custom_call.1} parent=1 // pred_check_branch
      %24 = sbr.rel (0) target = $region9
    $region8: #{tpu_custom_call.1} parent=1 // pred_region
      %s26 = ssub.s32 6144, 6144
      %27 = vsyncadd [#allocation6], %s26
      %s28 = sshll.u32 [#allocation5], 4
      %s29 = int_to_ptr.vmem [resolvable:$true] %s28
      %34 = dma.hbm_to_vmem [thread:$0]  %s1, 6144, %s29, [#allocation6], 128, 128, 8
    $region9: #{tpu_custom_call.1} parent=1 // pred_fallthru
      _
    // Predicated region
    $region10: #{tpu_custom_call.1} parent=1 // pred_check
      _
    $region11: #{tpu_custom_call.1} parent=1 // pred_check_branch
      %36 = sbr.rel (0) target = $region13
    $region12: #{tpu_custom_call.1} parent=1 // pred_region
      _
    $region13: #{tpu_custom_call.1} parent=1 // pred_fallthru
      _
    // Predicated region
    $region14: #{tpu_custom_call.1} parent=1 // pred_check
      _
    $region15: #{tpu_custom_call.1} parent=1 // pred_check_branch
      %38 = sbr.rel (0) target = $region17
    $region16: #{tpu_custom_call.1} parent=1 // pred_region
      %39 = dma.done [#allocation3], 2048
    $region17: #{tpu_custom_call.1} parent=1 // pred_fallthru
      _
    // Predicated region
    $region18: #{tpu_custom_call.1} parent=1 // pred_check
      _
    $region19: #{tpu_custom_call.1} parent=1 // pred_check_branch
      %41 = sbr.rel (0) target = $region21
    $region20: #{tpu_custom_call.1} parent=1 // pred_region
      %42 = dma.done [#allocation6], 6144
    $region21: #{tpu_custom_call.1} parent=1 // pred_fallthru
      _
    %v43 = vld [vmem:[#allocation2] sm:$0xff]
    %v44 = vld [vmem:[#allocation2 + $0x8] sm:$0xff]
    %v45 = vld [vmem:[#allocation2 + $0x10] sm:$0xff]
    %v46 = vld [vmem:[#allocation2 + $0x18] sm:$0xff]
    %v47 = vld [vmem:[#allocation2 + $0x20] sm:$0xff]
    %v48 = vld [vmem:[#allocation2 + $0x28] sm:$0xff]
    %v49 = vld [vmem:[#allocation2 + $0x30] sm:$0xff]
    %v50 = vld [vmem:[#allocation2 + $0x38] sm:$0xff]
    %v51 = vld [vmem:[#allocation2 + $0x40] sm:$0xff]
    %v52 = vld [vmem:[#allocation2 + $0x48] sm:$0xff]
    %v53 = vld [vmem:[#allocation2 + $0x50] sm:$0xff]
    %v54 = vld [vmem:[#allocation2 + $0x58] sm:$0xff]
    %v55 = vld [vmem:[#allocation2 + $0x60] sm:$0xff]
    %v56 = vld [vmem:[#allocation2 + $0x68] sm:$0xff]
    %v57 = vld [vmem:[#allocation2 + $0x70] sm:$0xff]
    %v58 = vld [vmem:[#allocation2 + $0x78] sm:$0xff]
    %v59 = vld [vmem:[#allocation5] sm:$0xff]
    %v60 = vld [vmem:[#allocation5 + $0x8] sm:$0xff]
    %v61 = vld [vmem:[#allocation5 + $0x10] sm:$0xff]
    %v62 = vld [vmem:[#allocation5 + $0x18] sm:$0xff]
    %v63 = vld [vmem:[#allocation5 + $0x20] sm:$0xff]
    %v64 = vld [vmem:[#allocation5 + $0x28] sm:$0xff]
    %v65 = vld [vmem:[#allocation5 + $0x30] sm:$0xff]
    %v66 = vld [vmem:[#allocation5 + $0x38] sm:$0xff]
    %v67 = vld [vmem:[#allocation5 + $0x40] sm:$0xff]
    %v68 = vld [vmem:[#allocation5 + $0x48] sm:$0xff]
    %v69 = vld [vmem:[#allocation5 + $0x50] sm:$0xff]
    %v70 = vld [vmem:[#allocation5 + $0x58] sm:$0xff]
    %v71 = vld [vmem:[#allocation5 + $0x60] sm:$0xff]
    %v72 = vld [vmem:[#allocation5 + $0x68] sm:$0xff]
    %v73 = vld [vmem:[#allocation5 + $0x70] sm:$0xff]
    %v74 = vld [vmem:[#allocation5 + $0x78] sm:$0xff]
    %v75 = vld [vmem:[%s2] sm:$0x1]
    %v77 = vlaneseq
    %v78 = vshrl.u32 %v77, 7
    %v79 = vsub.s32 0, %v78
    %v80 = vrot.slane %v75, %v79
    %82 = vmatprep.subr.mxu0 0.0
    %83 = vmatpush1.msra.mxu0 %v74
    %84 = vmatprep.subr.mxu0 0.0
    %85 = vmatpush1.msra.mxu0 %v73
    %86 = vmatprep.subr.mxu0 0.0
    %87 = vmatpush1.msra.mxu0 %v72
    %88 = vmatprep.subr.mxu0 0.0
    %89 = vmatpush1.msra.mxu0 %v71
    %90 = vmatprep.subr.mxu0 0.0
    %91 = vmatpush1.msra.mxu0 %v70
    %92 = vmatprep.subr.mxu0 0.0
    %93 = vmatpush1.msra.mxu0 %v69
    %94 = vmatprep.subr.mxu0 0.0
    %95 = vmatpush1.msra.mxu0 %v68
    %96 = vmatprep.subr.mxu0 0.0
    %97 = vmatpush1.msra.mxu0 %v67
    %98 = vmatprep.subr.mxu0 0.0
    %99 = vmatpush1.msra.mxu0 %v66
    %100 = vmatprep.subr.mxu0 0.0
    %101 = vmatpush1.msra.mxu0 %v65
    %102 = vmatprep.subr.mxu0 0.0
    %103 = vmatpush1.msra.mxu0 %v64
    %104 = vmatprep.subr.mxu0 0.0
    %105 = vmatpush1.msra.mxu0 %v63
    %106 = vmatprep.subr.mxu0 0.0
    %107 = vmatpush1.msra.mxu0 %v62
    %108 = vmatprep.subr.mxu0 0.0
    %109 = vmatpush1.msra.mxu0 %v61
    %110 = vmatprep.subr.mxu0 0.0
    %111 = vmatpush1.msra.mxu0 %v60
    %112 = vmatprep.subr.mxu0 0.0
    %113 = vmatpush1.msra.mxu0 %v59
    %114 = vmatprep.subr.mxu0 0.0
    %115 = vmatpush2.msra.mxu0 0.0
    %116 = vmatprep.subr.mxu0 0.0
    %117 = vmatpush2.msra.mxu0 0.0
    %118 = vmatprep.subr.mxu0 0.0
    %119 = vmatpush2.msra.mxu0 0.0
    %120 = vmatprep.subr.mxu0 0.0
    %121 = vmatpush2.msra.mxu0 0.0
    %122 = vmatprep.subr.mxu0 0.0
    %123 = vmatpush2.msra.mxu0 0.0
    %124 = vmatprep.subr.mxu0 0.0
    %125 = vmatpush2.msra.mxu0 0.0
    %126 = vmatprep.subr.mxu0 0.0
    %127 = vmatpush2.msra.mxu0 0.0
    %128 = vmatprep.subr.mxu0 0.0
    %129 = vmatpush2.msra.mxu0 0.0
    %130 = vmatprep.subr.mxu0 0.0
    %131 = vmatpush2.msra.mxu0 0.0
    %132 = vmatprep.subr.mxu0 0.0
    %133 = vmatpush2.msra.mxu0 0.0
    %134 = vmatprep.subr.mxu0 0.0
    %135 = vmatpush2.msra.mxu0 0.0
    %136 = vmatprep.subr.mxu0 0.0
    %137 = vmatpush2.msra.mxu0 0.0
    %138 = vmatprep.subr.mxu0 0.0
    %139 = vmatpush2.msra.mxu0 0.0
    %140 = vmatprep.subr.mxu0 0.0
    %141 = vmatpush2.msra.mxu0 0.0
    %142 = vmatprep.subr.mxu0 0.0
    %143 = vmatpush2.msra.mxu0 0.0
    %144 = vmatprep.subr.mxu0 0.0
    %145 = vmatpush2.msra.mxu0 0.0
    %146 = vmatprep.mubr.f32.mxu0 0.0
    %147 = vmatmul.mubr.f32.gmra.mxu0 %v43
    %v148 = vpop.f32.mrf.mxu0
    %v149 = vadd.f32 %v80, %v148
    %v150 = vpop.f32.mrf.mxu0
    %151 = vmatprep.mubr.f32.mxu0 0.0
    %152 = vmatmul.mubr.f32.gmra.mxu0 %v44
    %v153 = vpop.f32.mrf.mxu0
    %v154 = vadd.f32 %v80, %v153
    %v155 = vpop.f32.mrf.mxu0
    %156 = vmatprep.mubr.f32.mxu0 0.0
    %157 = vmatmul.mubr.f32.gmra.mxu0 %v45
    %v158 = vpop.f32.mrf.mxu0
    %v159 = vadd.f32 %v80, %v158
    %v160 = vpop.f32.mrf.mxu0
    %161 = vmatprep.mubr.f32.mxu0 0.0
    %162 = vmatmul.mubr.f32.gmra.mxu0 %v46
    %v163 = vpop.f32.mrf.mxu0
    %v164 = vadd.f32 %v80, %v163
    %v165 = vpop.f32.mrf.mxu0
    %166 = vmatprep.mubr.f32.mxu0 0.0
    %167 = vmatmul.mubr.f32.gmra.mxu0 %v47
    %v168 = vpop.f32.mrf.mxu0
    %v169 = vadd.f32 %v80, %v168
    %v170 = vpop.f32.mrf.mxu0
    %171 = vmatprep.mubr.f32.mxu0 0.0
    %172 = vmatmul.mubr.f32.gmra.mxu0 %v48
    %v173 = vpop.f32.mrf.mxu0
    %v174 = vadd.f32 %v80, %v173
    %v175 = vpop.f32.mrf.mxu0
    %176 = vmatprep.mubr.f32.mxu0 0.0
    %177 = vmatmul.mubr.f32.gmra.mxu0 %v49
    %v178 = vpop.f32.mrf.mxu0
    %v179 = vadd.f32 %v80, %v178
    %v180 = vpop.f32.mrf.mxu0
    %181 = vmatprep.mubr.f32.mxu0 0.0
    %182 = vmatmul.mubr.f32.gmra.mxu0 %v50
    %v183 = vpop.f32.mrf.mxu0
    %v184 = vadd.f32 %v80, %v183
    %v185 = vpop.f32.mrf.mxu0
    %186 = vmatprep.mubr.f32.mxu0 0.0
    %187 = vmatmul.mubr.f32.gmra.mxu0 %v51
    %v188 = vpop.f32.mrf.mxu0
    %v189 = vadd.f32 %v80, %v188
    %v190 = vpop.f32.mrf.mxu0
    %191 = vmatprep.mubr.f32.mxu0 0.0
    %192 = vmatmul.mubr.f32.gmra.mxu0 %v52
    %v193 = vpop.f32.mrf.mxu0
    %v194 = vadd.f32 %v80, %v193
    %v195 = vpop.f32.mrf.mxu0
    %196 = vmatprep.mubr.f32.mxu0 0.0
    %197 = vmatmul.mubr.f32.gmra.mxu0 %v53
    %v198 = vpop.f32.mrf.mxu0
    %v199 = vadd.f32 %v80, %v198
    %v200 = vpop.f32.mrf.mxu0
    %201 = vmatprep.mubr.f32.mxu0 0.0
    %202 = vmatmul.mubr.f32.gmra.mxu0 %v54
    %v203 = vpop.f32.mrf.mxu0
    %v204 = vadd.f32 %v80, %v203
    %v205 = vpop.f32.mrf.mxu0
    %206 = vmatprep.mubr.f32.mxu0 0.0
    %207 = vmatmul.mubr.f32.gmra.mxu0 %v55
    %v208 = vpop.f32.mrf.mxu0
    %v209 = vadd.f32 %v80, %v208
    %v210 = vpop.f32.mrf.mxu0
    %211 = vmatprep.mubr.f32.mxu0 0.0
    %212 = vmatmul.mubr.f32.gmra.mxu0 %v56
    %v213 = vpop.f32.mrf.mxu0
    %v214 = vadd.f32 %v80, %v213
    %v215 = vpop.f32.mrf.mxu0
    %216 = vmatprep.mubr.f32.mxu0 0.0
    %217 = vmatmul.mubr.f32.gmra.mxu0 %v57
    %v218 = vpop.f32.mrf.mxu0
    %v219 = vadd.f32 %v80, %v218
    %v220 = vpop.f32.mrf.mxu0
    %221 = vmatprep.mubr.f32.mxu0 0.0
    %222 = vmatmul.mubr.f32.gmra.mxu0 %v58
    %v223 = vpop.f32.mrf.mxu0
    %v224 = vadd.f32 %v80, %v223
    %v225 = vpop.f32.mrf.mxu0
    %226 = vdwg.mxu0
    %v227 = vmax.f32 %v149, 0.0
    %v228 = vmax.f32 %v154, 0.0
    %v229 = vmax.f32 %v159, 0.0
    %v230 = vmax.f32 %v164, 0.0
    %v231 = vmax.f32 %v169, 0.0
    %v232 = vmax.f32 %v174, 0.0
    %v233 = vmax.f32 %v179, 0.0
    %v234 = vmax.f32 %v184, 0.0
    %v235 = vmax.f32 %v189, 0.0
    %v236 = vmax.f32 %v194, 0.0
    %v237 = vmax.f32 %v199, 0.0
    %v238 = vmax.f32 %v204, 0.0
    %v239 = vmax.f32 %v209, 0.0
    %v240 = vmax.f32 %v214, 0.0
    %v241 = vmax.f32 %v219, 0.0
    %v242 = vmax.f32 %v224, 0.0
    %s243 = scalar_lea.vmem [#allocation5], 128
    %v244 = vld [vmem:[%s243] sm:$0xff]
    %v245 = vld [vmem:[%s243 + $0x8] sm:$0xff]
    %v246 = vld [vmem:[%s243 + $0x10] sm:$0xff]
    %v247 = vld [vmem:[%s243 + $0x18] sm:$0xff]
    %v248 = vld [vmem:[%s243 + $0x20] sm:$0xff]
    %v249 = vld [vmem:[%s243 + $0x28] sm:$0xff]
    %v250 = vld [vmem:[%s243 + $0x30] sm:$0xff]
    %v251 = vld [vmem:[%s243 + $0x38] sm:$0xff]
    %v252 = vld [vmem:[%s243 + $0x40] sm:$0xff]
    %v253 = vld [vmem:[%s243 + $0x48] sm:$0xff]
    %v254 = vld [vmem:[%s243 + $0x50] sm:$0xff]
    %v255 = vld [vmem:[%s243 + $0x58] sm:$0xff]
    %v256 = vld [vmem:[%s243 + $0x60] sm:$0xff]
    %v257 = vld [vmem:[%s243 + $0x68] sm:$0xff]
    %v258 = vld [vmem:[%s243 + $0x70] sm:$0xff]
    %v259 = vld [vmem:[%s243 + $0x78] sm:$0xff]
    %s260 = scalar_lea.vmem %s2, 1
    %v261 = vld [vmem:[%s260] sm:$0x1]
    %v263 = vlaneseq
    %v264 = vshrl.u32 %v263, 7
    %v265 = vsub.s32 0, %v264
    %v266 = vrot.slane %v261, %v265
    %268 = vmatprep.subr.mxu0 0.0
    %269 = vmatpush1.msra.mxu0 %v259
    %270 = vmatprep.subr.mxu0 0.0
    %271 = vmatpush1.msra.mxu0 %v258
    %272 = vmatprep.subr.mxu0 0.0
    %273 = vmatpush1.msra.mxu0 %v257
    %274 = vmatprep.subr.mxu0 0.0
    %275 = vmatpush1.msra.mxu0 %v256
    %276 = vmatprep.subr.mxu0 0.0
    %277 = vmatpush1.msra.mxu0 %v255
    %278 = vmatprep.subr.mxu0 0.0
    %279 = vmatpush1.msra.mxu0 %v254
    %280 = vmatprep.subr.mxu0 0.0
    %281 = vmatpush1.msra.mxu0 %v253
    %282 = vmatprep.subr.mxu0 0.0
    %283 = vmatpush1.msra.mxu0 %v252
    %284 = vmatprep.subr.mxu0 0.0
    %285 = vmatpush1.msra.mxu0 %v251
    %286 = vmatprep.subr.mxu0 0.0
    %287 = vmatpush1.msra.mxu0 %v250
    %288 = vmatprep.subr.mxu0 0.0
    %289 = vmatpush1.msra.mxu0 %v249
    %290 = vmatprep.subr.mxu0 0.0
    %291 = vmatpush1.msra.mxu0 %v248
    %292 = vmatprep.subr.mxu0 0.0
    %293 = vmatpush1.msra.mxu0 %v247
    %294 = vmatprep.subr.mxu0 0.0
    %295 = vmatpush1.msra.mxu0 %v246
    %296 = vmatprep.subr.mxu0 0.0
    %297 = vmatpush1.msra.mxu0 %v245
    %298 = vmatprep.subr.mxu0 0.0
    %299 = vmatpush1.msra.mxu0 %v244
    %300 = vmatprep.subr.mxu0 0.0
    %301 = vmatpush2.msra.mxu0 0.0
    %302 = vmatprep.subr.mxu0 0.0
    %303 = vmatpush2.msra.mxu0 0.0
    %304 = vmatprep.subr.mxu0 0.0
    %305 = vmatpush2.msra.mxu0 0.0
    %306 = vmatprep.subr.mxu0 0.0
    %307 = vmatpush2.msra.mxu0 0.0
    %308 = vmatprep.subr.mxu0 0.0
    %309 = vmatpush2.msra.mxu0 0.0
    %310 = vmatprep.subr.mxu0 0.0
    %311 = vmatpush2.msra.mxu0 0.0
    %312 = vmatprep.subr.mxu0 0.0
    %313 = vmatpush2.msra.mxu0 0.0
    %314 = vmatprep.subr.mxu0 0.0
    %315 = vmatpush2.msra.mxu0 0.0
    %316 = vmatprep.subr.mxu0 0.0
    %317 = vmatpush2.msra.mxu0 0.0
    %318 = vmatprep.subr.mxu0 0.0
    %319 = vmatpush2.msra.mxu0 0.0
    %320 = vmatprep.subr.mxu0 0.0
    %321 = vmatpush2.msra.mxu0 0.0
    %322 = vmatprep.subr.mxu0 0.0
    %323 = vmatpush2.msra.mxu0 0.0
    %324 = vmatprep.subr.mxu0 0.0
    %325 = vmatpush2.msra.mxu0 0.0
    %326 = vmatprep.subr.mxu0 0.0
    %327 = vmatpush2.msra.mxu0 0.0
    %328 = vmatprep.subr.mxu0 0.0
    %329 = vmatpush2.msra.mxu0 0.0
    %330 = vmatprep.subr.mxu0 0.0
    %331 = vmatpush2.msra.mxu0 0.0
    %332 = vmatprep.mubr.f32.mxu0 0.0
    %333 = vmatmul.mubr.f32.gmra.mxu0 %v227
    %v334 = vpop.f32.mrf.mxu0
    %v335 = vadd.f32 %v266, %v334
    %v336 = vpop.f32.mrf.mxu0
    %337 = vmatprep.mubr.f32.mxu0 0.0
    %338 = vmatmul.mubr.f32.gmra.mxu0 %v228
    %v339 = vpop.f32.mrf.mxu0
    %v340 = vadd.f32 %v266, %v339
    %v341 = vpop.f32.mrf.mxu0
    %342 = vmatprep.mubr.f32.mxu0 0.0
    %343 = vmatmul.mubr.f32.gmra.mxu0 %v229
    %v344 = vpop.f32.mrf.mxu0
    %v345 = vadd.f32 %v266, %v344
    %v346 = vpop.f32.mrf.mxu0
    %347 = vmatprep.mubr.f32.mxu0 0.0
    %348 = vmatmul.mubr.f32.gmra.mxu0 %v230
    %v349 = vpop.f32.mrf.mxu0
    %v350 = vadd.f32 %v266, %v349
    %v351 = vpop.f32.mrf.mxu0
    %352 = vmatprep.mubr.f32.mxu0 0.0
    %353 = vmatmul.mubr.f32.gmra.mxu0 %v231
    %v354 = vpop.f32.mrf.mxu0
    %v355 = vadd.f32 %v266, %v354
    %v356 = vpop.f32.mrf.mxu0
    %357 = vmatprep.mubr.f32.mxu0 0.0
    %358 = vmatmul.mubr.f32.gmra.mxu0 %v232
    %v359 = vpop.f32.mrf.mxu0
    %v360 = vadd.f32 %v266, %v359
    %v361 = vpop.f32.mrf.mxu0
    %362 = vmatprep.mubr.f32.mxu0 0.0
    %363 = vmatmul.mubr.f32.gmra.mxu0 %v233
    %v364 = vpop.f32.mrf.mxu0
    %v365 = vadd.f32 %v266, %v364
    %v366 = vpop.f32.mrf.mxu0
    %367 = vmatprep.mubr.f32.mxu0 0.0
    %368 = vmatmul.mubr.f32.gmra.mxu0 %v234
    %v369 = vpop.f32.mrf.mxu0
    %v370 = vadd.f32 %v266, %v369
    %v371 = vpop.f32.mrf.mxu0
    %372 = vmatprep.mubr.f32.mxu0 0.0
    %373 = vmatmul.mubr.f32.gmra.mxu0 %v235
    %v374 = vpop.f32.mrf.mxu0
    %v375 = vadd.f32 %v266, %v374
    %v376 = vpop.f32.mrf.mxu0
    %377 = vmatprep.mubr.f32.mxu0 0.0
    %378 = vmatmul.mubr.f32.gmra.mxu0 %v236
    %v379 = vpop.f32.mrf.mxu0
    %v380 = vadd.f32 %v266, %v379
    %v381 = vpop.f32.mrf.mxu0
    %382 = vmatprep.mubr.f32.mxu0 0.0
    %383 = vmatmul.mubr.f32.gmra.mxu0 %v237
    %v384 = vpop.f32.mrf.mxu0
    %v385 = vadd.f32 %v266, %v384
    %v386 = vpop.f32.mrf.mxu0
    %387 = vmatprep.mubr.f32.mxu0 0.0
    %388 = vmatmul.mubr.f32.gmra.mxu0 %v238
    %v389 = vpop.f32.mrf.mxu0
    %v390 = vadd.f32 %v266, %v389
    %v391 = vpop.f32.mrf.mxu0
    %392 = vmatprep.mubr.f32.mxu0 0.0
    %393 = vmatmul.mubr.f32.gmra.mxu0 %v239
    %v394 = vpop.f32.mrf.mxu0
    %v395 = vadd.f32 %v266, %v394
    %v396 = vpop.f32.mrf.mxu0
    %397 = vmatprep.mubr.f32.mxu0 0.0
    %398 = vmatmul.mubr.f32.gmra.mxu0 %v240
    %v399 = vpop.f32.mrf.mxu0
    %v400 = vadd.f32 %v266, %v399
    %v401 = vpop.f32.mrf.mxu0
    %402 = vmatprep.mubr.f32.mxu0 0.0
    %403 = vmatmul.mubr.f32.gmra.mxu0 %v241
    %v404 = vpop.f32.mrf.mxu0
    %v405 = vadd.f32 %v266, %v404
    %v406 = vpop.f32.mrf.mxu0
    %407 = vmatprep.mubr.f32.mxu0 0.0
    %408 = vmatmul.mubr.f32.gmra.mxu0 %v242
    %v409 = vpop.f32.mrf.mxu0
    %v410 = vadd.f32 %v266, %v409
    %v411 = vpop.f32.mrf.mxu0
    %412 = vdwg.mxu0
    %v413 = vmax.f32 %v335, 0.0
    %v414 = vmax.f32 %v340, 0.0
    %v415 = vmax.f32 %v345, 0.0
    %v416 = vmax.f32 %v350, 0.0
    %v417 = vmax.f32 %v355, 0.0
    %v418 = vmax.f32 %v360, 0.0
    %v419 = vmax.f32 %v365, 0.0
    %v420 = vmax.f32 %v370, 0.0
    %v421 = vmax.f32 %v375, 0.0
    %v422 = vmax.f32 %v380, 0.0
    %v423 = vmax.f32 %v385, 0.0
    %v424 = vmax.f32 %v390, 0.0
    %v425 = vmax.f32 %v395, 0.0
    %v426 = vmax.f32 %v400, 0.0
    %v427 = vmax.f32 %v405, 0.0
    %v428 = vmax.f32 %v410, 0.0
    %s429 = scalar_lea.vmem [#allocation5], 256
    %v430 = vld [vmem:[%s429] sm:$0xff]
    %v431 = vld [vmem:[%s429 + $0x8] sm:$0xff]
    %v432 = vld [vmem:[%s429 + $0x10] sm:$0xff]
    %v433 = vld [vmem:[%s429 + $0x18] sm:$0xff]
    %v434 = vld [vmem:[%s429 + $0x20] sm:$0xff]
    %v435 = vld [vmem:[%s429 + $0x28] sm:$0xff]
    %v436 = vld [vmem:[%s429 + $0x30] sm:$0xff]
    %v437 = vld [vmem:[%s429 + $0x38] sm:$0xff]
    %v438 = vld [vmem:[%s429 + $0x40] sm:$0xff]
    %v439 = vld [vmem:[%s429 + $0x48] sm:$0xff]
    %v440 = vld [vmem:[%s429 + $0x50] sm:$0xff]
    %v441 = vld [vmem:[%s429 + $0x58] sm:$0xff]
    %v442 = vld [vmem:[%s429 + $0x60] sm:$0xff]
    %v443 = vld [vmem:[%s429 + $0x68] sm:$0xff]
    %v444 = vld [vmem:[%s429 + $0x70] sm:$0xff]
    %v445 = vld [vmem:[%s429 + $0x78] sm:$0xff]
    %s446 = scalar_lea.vmem %s2, 2
    %v447 = vld [vmem:[%s446] sm:$0x1]
    %v449 = vlaneseq
    %v450 = vshrl.u32 %v449, 7
    %v451 = vsub.s32 0, %v450
    %v452 = vrot.slane %v447, %v451
    %454 = vmatprep.subr.mxu0 0.0
    %455 = vmatpush1.msra.mxu0 %v445
    %456 = vmatprep.subr.mxu0 0.0
    %457 = vmatpush1.msra.mxu0 %v444
    %458 = vmatprep.subr.mxu0 0.0
    %459 = vmatpush1.msra.mxu0 %v443
    %460 = vmatprep.subr.mxu0 0.0
    %461 = vmatpush1.msra.mxu0 %v442
    %462 = vmatprep.subr.mxu0 0.0
    %463 = vmatpush1.msra.mxu0 %v441
    %464 = vmatprep.subr.mxu0 0.0
    %465 = vmatpush1.msra.mxu0 %v440
    %466 = vmatprep.subr.mxu0 0.0
    %467 = vmatpush1.msra.mxu0 %v439
    %468 = vmatprep.subr.mxu0 0.0
    %469 = vmatpush1.msra.mxu0 %v438
    %470 = vmatprep.subr.mxu0 0.0
    %471 = vmatpush1.msra.mxu0 %v437
    %472 = vmatprep.subr.mxu0 0.0
    %473 = vmatpush1.msra.mxu0 %v436
    %474 = vmatprep.subr.mxu0 0.0
    %475 = vmatpush1.msra.mxu0 %v435
    %476 = vmatprep.subr.mxu0 0.0
    %477 = vmatpush1.msra.mxu0 %v434
    %478 = vmatprep.subr.mxu0 0.0
    %479 = vmatpush1.msra.mxu0 %v433
    %480 = vmatprep.subr.mxu0 0.0
    %481 = vmatpush1.msra.mxu0 %v432
    %482 = vmatprep.subr.mxu0 0.0
    %483 = vmatpush1.msra.mxu0 %v431
    %484 = vmatprep.subr.mxu0 0.0
    %485 = vmatpush1.msra.mxu0 %v430
    %486 = vmatprep.subr.mxu0 0.0
    %487 = vmatpush2.msra.mxu0 0.0
    %488 = vmatprep.subr.mxu0 0.0
    %489 = vmatpush2.msra.mxu0 0.0
    %490 = vmatprep.subr.mxu0 0.0
    %491 = vmatpush2.msra.mxu0 0.0
    %492 = vmatprep.subr.mxu0 0.0
    %493 = vmatpush2.msra.mxu0 0.0
    %494 = vmatprep.subr.mxu0 0.0
    %495 = vmatpush2.msra.mxu0 0.0
    %496 = vmatprep.subr.mxu0 0.0
    %497 = vmatpush2.msra.mxu0 0.0
    %498 = vmatprep.subr.mxu0 0.0
    %499 = vmatpush2.msra.mxu0 0.0
    %500 = vmatprep.subr.mxu0 0.0
    %501 = vmatpush2.msra.mxu0 0.0
    %502 = vmatprep.subr.mxu0 0.0
    %503 = vmatpush2.msra.mxu0 0.0
    %504 = vmatprep.subr.mxu0 0.0
    %505 = vmatpush2.msra.mxu0 0.0
    %506 = vmatprep.subr.mxu0 0.0
    %507 = vmatpush2.msra.mxu0 0.0
    %508 = vmatprep.subr.mxu0 0.0
    %509 = vmatpush2.msra.mxu0 0.0
    %510 = vmatprep.subr.mxu0 0.0
    %511 = vmatpush2.msra.mxu0 0.0
    %512 = vmatprep.subr.mxu0 0.0
    %513 = vmatpush2.msra.mxu0 0.0
    %514 = vmatprep.subr.mxu0 0.0
    %515 = vmatpush2.msra.mxu0 0.0
    %516 = vmatprep.subr.mxu0 0.0
    %517 = vmatpush2.msra.mxu0 0.0
    %518 = vmatprep.mubr.f32.mxu0 0.0
    %519 = vmatmul.mubr.f32.gmra.mxu0 %v413
    %v520 = vpop.f32.mrf.mxu0
    %v521 = vadd.f32 %v452, %v520
    %v522 = vpop.f32.mrf.mxu0
    %523 = vmatprep.mubr.f32.mxu0 0.0
    %524 = vmatmul.mubr.f32.gmra.mxu0 %v414
    %v525 = vpop.f32.mrf.mxu0
    %v526 = vadd.f32 %v452, %v525
    %v527 = vpop.f32.mrf.mxu0
    %528 = vmatprep.mubr.f32.mxu0 0.0
    %529 = vmatmul.mubr.f32.gmra.mxu0 %v415
    %v530 = vpop.f32.mrf.mxu0
    %v531 = vadd.f32 %v452, %v530
    %v532 = vpop.f32.mrf.mxu0
    %533 = vmatprep.mubr.f32.mxu0 0.0
    %534 = vmatmul.mubr.f32.gmra.mxu0 %v416
    %v535 = vpop.f32.mrf.mxu0
    %v536 = vadd.f32 %v452, %v535
    %v537 = vpop.f32.mrf.mxu0
    %538 = vmatprep.mubr.f32.mxu0 0.0
    %539 = vmatmul.mubr.f32.gmra.mxu0 %v417
    %v540 = vpop.f32.mrf.mxu0
    %v541 = vadd.f32 %v452, %v540
    %v542 = vpop.f32.mrf.mxu0
    %543 = vmatprep.mubr.f32.mxu0 0.0
    %544 = vmatmul.mubr.f32.gmra.mxu0 %v418
    %v545 = vpop.f32.mrf.mxu0
    %v546 = vadd.f32 %v452, %v545
    %v547 = vpop.f32.mrf.mxu0
    %548 = vmatprep.mubr.f32.mxu0 0.0
    %549 = vmatmul.mubr.f32.gmra.mxu0 %v419
    %v550 = vpop.f32.mrf.mxu0
    %v551 = vadd.f32 %v452, %v550
    %v552 = vpop.f32.mrf.mxu0
    %553 = vmatprep.mubr.f32.mxu0 0.0
    %554 = vmatmul.mubr.f32.gmra.mxu0 %v420
    %v555 = vpop.f32.mrf.mxu0
    %v556 = vadd.f32 %v452, %v555
    %v557 = vpop.f32.mrf.mxu0
    %558 = vmatprep.mubr.f32.mxu0 0.0
    %559 = vmatmul.mubr.f32.gmra.mxu0 %v421
    %v560 = vpop.f32.mrf.mxu0
    %v561 = vadd.f32 %v452, %v560
    %v562 = vpop.f32.mrf.mxu0
    %563 = vmatprep.mubr.f32.mxu0 0.0
    %564 = vmatmul.mubr.f32.gmra.mxu0 %v422
    %v565 = vpop.f32.mrf.mxu0
    %v566 = vadd.f32 %v452, %v565
    %v567 = vpop.f32.mrf.mxu0
    %568 = vmatprep.mubr.f32.mxu0 0.0
    %569 = vmatmul.mubr.f32.gmra.mxu0 %v423
    %v570 = vpop.f32.mrf.mxu0
    %v571 = vadd.f32 %v452, %v570
    %v572 = vpop.f32.mrf.mxu0
    %573 = vmatprep.mubr.f32.mxu0 0.0
    %574 = vmatmul.mubr.f32.gmra.mxu0 %v424
    %v575 = vpop.f32.mrf.mxu0
    %v576 = vadd.f32 %v452, %v575
    %v577 = vpop.f32.mrf.mxu0
    %578 = vmatprep.mubr.f32.mxu0 0.0
    %579 = vmatmul.mubr.f32.gmra.mxu0 %v425
    %v580 = vpop.f32.mrf.mxu0
    %v581 = vadd.f32 %v452, %v580
    %v582 = vpop.f32.mrf.mxu0
    %583 = vmatprep.mubr.f32.mxu0 0.0
    %584 = vmatmul.mubr.f32.gmra.mxu0 %v426
    %v585 = vpop.f32.mrf.mxu0
    %v586 = vadd.f32 %v452, %v585
    %v587 = vpop.f32.mrf.mxu0
    %588 = vmatprep.mubr.f32.mxu0 0.0
    %589 = vmatmul.mubr.f32.gmra.mxu0 %v427
    %v590 = vpop.f32.mrf.mxu0
    %v591 = vadd.f32 %v452, %v590
    %v592 = vpop.f32.mrf.mxu0
    %593 = vmatprep.mubr.f32.mxu0 0.0
    %594 = vmatmul.mubr.f32.gmra.mxu0 %v428
    %v595 = vpop.f32.mrf.mxu0
    %v596 = vadd.f32 %v452, %v595
    %v597 = vpop.f32.mrf.mxu0
    %598 = vdwg.mxu0
    %599 = vst [vmem:[#allocation7] sm:$0xff] %v521
    %600 = vst [vmem:[#allocation7 + $0x8] sm:$0xff] %v526
    %601 = vst [vmem:[#allocation7 + $0x10] sm:$0xff] %v531
    %602 = vst [vmem:[#allocation7 + $0x18] sm:$0xff] %v536
    %603 = vst [vmem:[#allocation7 + $0x20] sm:$0xff] %v541
    %604 = vst [vmem:[#allocation7 + $0x28] sm:$0xff] %v546
    %605 = vst [vmem:[#allocation7 + $0x30] sm:$0xff] %v551
    %606 = vst [vmem:[#allocation7 + $0x38] sm:$0xff] %v556
    %607 = vst [vmem:[#allocation7 + $0x40] sm:$0xff] %v561
    %608 = vst [vmem:[#allocation7 + $0x48] sm:$0xff] %v566
    %609 = vst [vmem:[#allocation7 + $0x50] sm:$0xff] %v571
    %610 = vst [vmem:[#allocation7 + $0x58] sm:$0xff] %v576
    %611 = vst [vmem:[#allocation7 + $0x60] sm:$0xff] %v581
    %612 = vst [vmem:[#allocation7 + $0x68] sm:$0xff] %v586
    %613 = vst [vmem:[#allocation7 + $0x70] sm:$0xff] %v591
    %614 = vst [vmem:[#allocation7 + $0x78] sm:$0xff] %v596
    // Predicated region
    $region22: #{tpu_custom_call.1} parent=1 // pred_check
      _
    $region23: #{tpu_custom_call.1} parent=1 // pred_check_branch
      %616 = sbr.rel (0) target = $region25
    $region24: #{tpu_custom_call.1} parent=1 // pred_region
      %s618 = ssub.s32 2048, 2048
      %619 = vsyncadd [#allocation4], %s618
      %s620 = sshll.u32 [#allocation7], 4
      %s621 = int_to_ptr.vmem [resolvable:$true] %s620
      %626 = dma.vmem_to_hbm [thread:$0]  %s621, 2048, %s3, [#allocation4], 128, 128, 8
    $region25: #{tpu_custom_call.1} parent=1 // pred_fallthru
      _
    // Predicated region
    $region26: #{tpu_custom_call.1} parent=1 // pred_check
      _
    $region27: #{tpu_custom_call.1} parent=1 // pred_check_branch
      %628 = sbr.rel (0) target = $region29
    $region28: #{tpu_custom_call.1} parent=1 // pred_region
      %629 = dma.done [#allocation4], 2048
    $region29: #{tpu_custom_call.1} parent=1 // pred_fallthru
      _
    %630 = vsyncpa [#allocation3], 1
    %631 = vsyncpa [#allocation6], 1
    %632 = vsyncpa [#allocation4], 1

</llo_original>
